<compile_context>
chip_gen: v7x
topology: tpu7x:2x2x1
jax: 0.10.0
libtpu: 0.0.40
codegen_flags: <defaults>
</compile_context>

<pallas_src>
import functools
import math

import jax
import jax.numpy as jnp
from jax.experimental import pallas as pl
from jax.experimental.pallas import tpu as pltpu

# Module hyper-parameters (defaults from SphereProduct2.__init__).
LAMB = 0.7
R = 30.0
MARGIN = 0.4
T_POW = 3            # static int; lowered to plain multiplies below
B_BIAS = 0.25
EPS = 1e-12          # F.normalize default eps


def _round_up(n, m):
    return ((n + m - 1) // m) * m


def _ceil_div(n, m):
    return (n + m - 1) // m


def _stable_softplus(z):
    # log(1 + exp(z)) without overflow; one exp + one log1p per element.
    return jnp.maximum(z, 0.0) + jnp.log1p(jnp.exp(-jnp.abs(z)))


def _sphere_product2_kernel(x_ref, wt_ref, lab_ref, o_ref, *, n_valid_cols):
    """x_ref: (tb, D) bf16 normalized rows; wt_ref: (D, tc) bf16 normalized
    columns; lab_ref: (tb, 1) int32; o_ref: (tb, 1) f32 per-sample sums."""
    c = pl.program_id(1)

    # Output block index is constant along the class axis -> it is resident
    # and serves as the accumulator. Zero it on the first class step.
    @pl.when(c == 0)
    def _():
        o_ref[...] = jnp.zeros_like(o_ref)

    # cos_theta tile: bf16 x bf16 on the MXU, f32 accumulate, standard
    # (lane, sublane) contraction -> no transpose on the data path.
    cos = jax.lax.dot_general(
        x_ref[...], wt_ref[...],
        dimension_numbers=(((1,), (0,)), ((), ())),
        preferred_element_type=jnp.float32)
    cos = jnp.clip(cos, -1.0, 1.0)

    # g = 2*((cos+1)/2)**3 - 1, folded into the logits:
    #   z_neg = R*(g + m) + b = 2R*h^3 + (R*(m-1) + b)
    #   z_pos = -(R*(g - m) + b) = -2R*h^3 + (R*(1+m) - b)
    h = (cos + 1.0) * 0.5
    h3 = h * h * h                                   # T_POW = 3

    z_n = (2.0 * R) * h3 + (R * (MARGIN - 1.0) + B_BIAS)
    sp_n = _stable_softplus(z_n)                     # unscaled negative branch

    tc_blk = wt_ref.shape[1]
    col = jax.lax.broadcasted_iota(jnp.int32, (1, tc_blk), 1) + c * tc_blk
    lab = lab_ref[...]                               # (tb, 1) int32
    is_lab = col == lab                              # (tb, tc) via broadcast
    col_valid = col < n_valid_cols                   # (1, tc) mask of real cols

    # Negative branch: sum over valid, non-label columns; scale once per row.
    neg_mask = jnp.logical_and(col_valid, jnp.logical_not(is_lab))
    neg_sum = jnp.sum(jnp.where(neg_mask, sp_n, 0.0), axis=1, keepdims=True)

    # Positive branch only at the label column (if it falls in this tile).
    one_hot = is_lab.astype(jnp.float32)
    in_tile = jnp.sum(one_hot, axis=1, keepdims=True)     # 1 iff label in tile
    h3_lab = jnp.sum(one_hot * h3, axis=1, keepdims=True)
    z_p = (-2.0 * R) * h3_lab + (R * (1.0 + MARGIN) - B_BIAS)
    pos_lab = (LAMB / R) * _stable_softplus(z_p)

    o_ref[...] += ((1.0 - LAMB) / R) * neg_sum + in_tile * pos_lab


def sphere_product2_loss(x, weight, label, *, tb=None, tc=None,
                         num_batch_shards=1):
    """x: (B, D) f32; weight: (C, D) f32; label: (B,) int. Returns scalar f32.

    num_batch_shards: set to 2 on v7x so both TensorCores get a batch tile;
    leave at 1 on v5e/v6e so the weight matrix is streamed from HBM once.
    """
    B, D = x.shape
    C = weight.shape[0]

    # ---- wrapper-side precompute: row-normalize both operands in f32, cast
    # to bf16; weight is stored transposed (D, C) so the class dim is lane. ---
    x32 = x.astype(jnp.float32)
    xn = (x32 * jax.lax.rsqrt(
        jnp.maximum(jnp.sum(x32 * x32, axis=-1, keepdims=True), EPS * EPS))
          ).astype(jnp.bfloat16)
    # TODO(synk): if closer f32 parity is needed, keep xn in f32 (mixed
    # f32 x bf16 MXU) at the cost of 2x x-side HBM bytes.
    w32 = weight.astype(jnp.float32)
    wn = w32 * jax.lax.rsqrt(
        jnp.maximum(jnp.sum(w32 * w32, axis=-1, keepdims=True), EPS * EPS))
    wnt = wn.T.astype(jnp.bfloat16)                       # (D, C)

    # ---- tile selection ----
    if tb is None:
        # Whole padded batch per shard -> weight stream read exactly once per
        # shard. x block is resident along the class axis anyway.
        tb = _round_up(_ceil_div(B, num_batch_shards), 8)
    tb = min(_round_up(tb, 8), _round_up(B, 8))
    Bp = _round_up(B, tb)

    if tc is None:
        # Lane-dense class tile; big enough to amortize per-step overhead,
        # capped so the ~4-6 live (tb, tc) f32 temporaries fit v7x's 64 MiB.
        tc = min(2048, _round_up(C, 128))
        while tc > 128 and tb * tc > (2 << 20):
            tc = _round_up(tc // 2, 128)
    tc = max(128, _round_up(tc, 128))
    Cp = _round_up(C, tc)

    xp = jnp.pad(xn, ((0, Bp - B), (0, 0)))
    wtp = jnp.pad(wnt, ((0, 0), (0, Cp - C)))
    labp = jnp.pad(label.reshape(B, 1).astype(jnp.int32),
                   ((0, Bp - B), (0, 0)), constant_values=-1)

    grid = (Bp // tb, Cp // tc)

    # VMEM budget: double-buffered bf16 x / wT blocks + label/output blocks
    # + ~6 live (tb, tc) f32 temporaries + headroom; capped at 64 MiB (v7x).
    vmem_bytes = (2 * (tb * D + D * tc) * 2
                  + 2 * tb * (4 + 4)
                  + 6 * tb * tc * 4
                  + (4 << 20))
    vmem_limit = int(min(max(vmem_bytes, 32 << 20), 64 << 20))

    kernel = functools.partial(_sphere_product2_kernel, n_valid_cols=C)

    per_sample = pl.pallas_call(
        kernel,
        out_shape=jax.ShapeDtypeStruct((Bp, 1), jnp.float32),
        grid_spec=pltpu.PrefetchScalarGridSpec(
            num_scalar_prefetch=0,
            grid=grid,
            in_specs=[
                pl.BlockSpec((tb, D), lambda b, c: (b, 0)),   # normalized x, bf16
                pl.BlockSpec((D, tc), lambda b, c: (0, c)),   # normalized W^T, bf16
                pl.BlockSpec((tb, 1), lambda b, c: (b, 0)),   # labels, int32
            ],
            out_specs=pl.BlockSpec((tb, 1), lambda b, c: (b, 0)),
        ),
        compiler_params=pltpu.CompilerParams(
            dimension_semantics=("parallel", "arbitrary"),
            vmem_limit_bytes=vmem_limit),
    )(xp, wtp, labp)

    # mean over the *real* batch rows (padded rows are dropped here)
    return jnp.sum(per_sample[:B, 0]) / B


def sphere_product2_reference(x, weight, label):
    """Pure-JAX f32 reference matching the torch module literally."""
    xn = x / jnp.maximum(jnp.linalg.norm(x, axis=1, keepdims=True), EPS)
    wn = weight / jnp.maximum(jnp.linalg.norm(weight, axis=1, keepdims=True), EPS)
    cos = jnp.clip(xn @ wn.T, -1.0, 1.0)
    g = 2.0 * ((cos + 1.0) / 2.0) ** T_POW - 1.0
    cos_m = R * (g - MARGIN) + B_BIAS
    cos_m1 = R * (g + MARGIN) + B_BIAS
    cos_p = (LAMB / R) * jnp.log(1.0 + jnp.exp(-cos_m))
    cos_n = ((1.0 - LAMB) / R) * jnp.log(1.0 + jnp.exp(cos_m1))
    one_hot = jax.nn.one_hot(label, weight.shape[0], dtype=jnp.float32)
    loss = one_hot * cos_p + (1.0 - one_hot) * cos_n
    return loss.sum(axis=1).mean()


def xavier_uniform(key, shape):
    fan_out, fan_in = shape
    bound = math.sqrt(6.0 / (fan_in + fan_out))
    return jax.random.uniform(key, shape, dtype=jnp.float32,
                              minval=-bound, maxval=bound)


if __name__ == "__main__":
    in_features = 32
    out_features = 300     # padded to 384 classes (tc=128 -> 3 class steps)
    batch = 24

    key = jax.random.PRNGKey(0)
    kx, kw, kl = jax.random.split(key, 3)

    x = jax.random.normal(kx, (batch, in_features), dtype=jnp.float32)
    weight = xavier_uniform(kw, (out_features, in_features))
    label = jax.random.randint(kl, (batch,), 0, out_features, dtype=jnp.int32)

    # small explicit tiles so the multi-tile grid / padding / accumulation
    # paths are all exercised (3 batch tiles x 3 class tiles)
    loss_fn = jax.jit(
        lambda xx, ww, ll: sphere_product2_loss(xx, ww, ll, tb=8, tc=128))
    loss = jax.block_until_ready(loss_fn(x, weight, label))

    ref = sphere_product2_reference(x, weight, label)
    assert loss.shape == () and bool(jnp.isfinite(loss))
    # bf16 MXU operands -> small tolerance vs the f32 reference
    assert abs(float(loss) - float(ref)) <= 0.02 + 0.05 * abs(float(ref)), (loss, ref)

    # also exercise the default (single-batch-tile, lane-dense) tiling path
    loss2 = jax.block_until_ready(
        jax.jit(sphere_product2_loss)(x, weight, label))
    assert abs(float(loss2) - float(ref)) <= 0.02 + 0.05 * abs(float(ref)), (loss2, ref)

    print("KERNEL_OK")
</pallas_src>

<mosaic_0001>
module attributes {stable_mosaic.version = 11 : i64} {
  func.func @_sphere_product2_kernel(%arg0: i32, %arg1: i32, %arg2: memref<8x32xbf16, #tpu.memory_space<vmem>>, %arg3: memref<32x128xbf16, #tpu.memory_space<vmem>>, %arg4: memref<8x1xi32, #tpu.memory_space<vmem>>, %arg5: memref<8x1xf32, #tpu.memory_space<vmem>>) attributes {dimension_semantics = [#tpu.dimension_semantics<parallel>, #tpu.dimension_semantics<arbitrary>], iteration_bounds = array<i64: 3, 3>, scalar_prefetch = 0 : i64, scratch_operands = 0 : i64, tpu.core_type = #tpu.core_type<tc>, window_params = [{transform_indices = @transform_0, window_bounds = array<i64: 8, 32>}, {transform_indices = @transform_1, window_bounds = array<i64: 32, 128>}, {transform_indices = @transform_2, window_bounds = array<i64: 8, 1>}, {transform_indices = @transform_3, window_bounds = array<i64: 8, 1>}]} {
    %c0_i32 = arith.constant 0 : i32
    %0 = arith.cmpi eq, %arg1, %c0_i32 : i32
    %1 = arith.extui %0 : i1 to i32
    %c0_i32_0 = arith.constant 0 : i32
    %2 = arith.cmpi ne, %1, %c0_i32_0 : i32
    scf.if %2 {
      %cst_29 = arith.constant 0.000000e+00 : f32
      %73 = vector.broadcast %cst_29 : f32 to vector<8x1xf32>
      %c0_30 = arith.constant 0 : index
      %c0_31 = arith.constant 0 : index
      %74 = vector.load %arg5[%c0_30, %c0_31] : memref<8x1xf32, #tpu.memory_space<vmem>>, vector<8x1xf32>
      tpu.vector_store %arg5[%c0_30, %c0_31], %73 {strides = array<i32>} : memref<8x1xf32, #tpu.memory_space<vmem>>, vector<8x1xf32>,
    } else {
    }
    %c0 = arith.constant 0 : index
    %c0_1 = arith.constant 0 : index
    %3 = vector.load %arg2[%c0, %c0_1] : memref<8x32xbf16, #tpu.memory_space<vmem>>, vector<8x32xbf16>
    %c0_2 = arith.constant 0 : index
    %c0_3 = arith.constant 0 : index
    %4 = vector.load %arg3[%c0_2, %c0_3] : memref<32x128xbf16, #tpu.memory_space<vmem>>, vector<32x128xbf16>
    %cst = arith.constant dense<0.000000e+00> : vector<8x128xf32>
    %5 = tpu.matmul %3, %4, %cst {dimension_numbers = #tpu.dot_dimension_numbers<[1], [0], [0], [1], [0, 0, 1, 1], [], []>} : vector<8x32xbf16>, vector<32x128xbf16>, vector<8x128xf32> -> vector<8x128xf32>
    %cst_4 = arith.constant -1.000000e+00 : f32
    %cst_5 = arith.constant 1.000000e+00 : f32
    %6 = vector.broadcast %cst_4 : f32 to vector<8x128xf32>
    %7 = arith.maximumf %6, %5 : vector<8x128xf32>
    %8 = vector.broadcast %cst_5 : f32 to vector<8x128xf32>
    %9 = arith.minimumf %8, %7 : vector<8x128xf32>
    %cst_6 = arith.constant 1.000000e+00 : f32
    %10 = vector.broadcast %cst_6 : f32 to vector<8x128xf32>
    %11 = arith.addf %9, %10 : vector<8x128xf32>
    %cst_7 = arith.constant 5.000000e-01 : f32
    %12 = vector.broadcast %cst_7 : f32 to vector<8x128xf32>
    %13 = arith.mulf %11, %12 : vector<8x128xf32>
    %14 = arith.mulf %13, %13 : vector<8x128xf32>
    %15 = arith.mulf %14, %13 : vector<8x128xf32>
    %cst_8 = arith.constant 6.000000e+01 : f32
    %16 = vector.broadcast %cst_8 : f32 to vector<8x128xf32>
    %17 = arith.mulf %16, %15 : vector<8x128xf32>
    %cst_9 = arith.constant -1.775000e+01 : f32
    %18 = vector.broadcast %cst_9 : f32 to vector<8x128xf32>
    %19 = arith.addf %17, %18 : vector<8x128xf32>
    %cst_10 = arith.constant 0.000000e+00 : f32
    %20 = vector.broadcast %cst_10 : f32 to vector<8x128xf32>
    %21 = arith.maximumf %19, %20 : vector<8x128xf32>
    %22 = math.absf %19 : vector<8x128xf32>
    %cst_11 = arith.constant 0.000000e+00 : f32
    %23 = vector.broadcast %cst_11 : f32 to vector<8x128xf32>
    %24 = arith.subf %23, %22 : vector<8x128xf32>
    %25 = math.exp %24 : vector<8x128xf32>
    %26 = math.log1p %25 : vector<8x128xf32>
    %27 = arith.addf %21, %26 : vector<8x128xf32>
    %28 = tpu.iota {dimensions = array<i32: 1>} : vector<1x128xi32>
    %c128_i32 = arith.constant 128 : i32
    %29 = arith.muli %arg1, %c128_i32 : i32
    %30 = vector.broadcast %29 : i32 to vector<1x128xi32>
    %31 = arith.addi %28, %30 : vector<1x128xi32>
    %c0_12 = arith.constant 0 : index
    %c0_13 = arith.constant 0 : index
    %32 = vector.load %arg4[%c0_12, %c0_13] : memref<8x1xi32, #tpu.memory_space<vmem>>, vector<8x1xi32>
    %33 = vector.broadcast %31 : vector<1x128xi32> to vector<8x128xi32>
    %34 = vector.broadcast %32 : vector<8x1xi32> to vector<8x128xi32>
    %35 = arith.cmpi eq, %33, %34 : vector<8x128xi32>
    %c300_i32 = arith.constant 300 : i32
    %36 = vector.broadcast %c300_i32 : i32 to vector<1x128xi32>
    %37 = arith.cmpi slt, %31, %36 : vector<1x128xi32>
    %cst_14 = arith.constant dense<true> : vector<8x128xi1>
    %38 = arith.xori %35, %cst_14 : vector<8x128xi1>
    %39 = vector.broadcast %37 : vector<1x128xi1> to vector<8x128xi1>
    %40 = arith.andi %39, %38 : vector<8x128xi1>
    %cst_15 = arith.constant 0.000000e+00 : f32
    %41 = vector.broadcast %cst_15 : f32 to vector<8x128xf32>
    %42 = arith.select %40, %27, %41 : vector<8x128xi1>, vector<8x128xf32>
    %cst_16 = arith.constant dense<0.000000e+00> : vector<8xf32>
    %43 = vector.multi_reduction <add>, %42, %cst_16 [1] : vector<8x128xf32> to vector<8xf32>
    %44 = vector.shape_cast %43 : vector<8xf32> to vector<8x1xf32>
    %45 = arith.extui %35 : vector<8x128xi1> to vector<8x128xi32>
    %46 = arith.sitofp %45 : vector<8x128xi32> to vector<8x128xf32>
    %cst_17 = arith.constant dense<0.000000e+00> : vector<8xf32>
    %47 = vector.multi_reduction <add>, %46, %cst_17 [1] : vector<8x128xf32> to vector<8xf32>
    %48 = vector.shape_cast %47 : vector<8xf32> to vector<8x1xf32>
    %49 = arith.mulf %46, %15 : vector<8x128xf32>
    %cst_18 = arith.constant dense<0.000000e+00> : vector<8xf32>
    %50 = vector.multi_reduction <add>, %49, %cst_18 [1] : vector<8x128xf32> to vector<8xf32>
    %51 = vector.shape_cast %50 : vector<8xf32> to vector<8x1xf32>
    %cst_19 = arith.constant -6.000000e+01 : f32
    %52 = vector.broadcast %cst_19 : f32 to vector<8x1xf32>
    %53 = arith.mulf %52, %51 : vector<8x1xf32>
    %cst_20 = arith.constant 4.175000e+01 : f32
    %54 = vector.broadcast %cst_20 : f32 to vector<8x1xf32>
    %55 = arith.addf %53, %54 : vector<8x1xf32>
    %cst_21 = arith.constant 0.000000e+00 : f32
    %56 = vector.broadcast %cst_21 : f32 to vector<8x1xf32>
    %57 = arith.maximumf %55, %56 : vector<8x1xf32>
    %58 = math.absf %55 : vector<8x1xf32>
    %cst_22 = arith.constant 0.000000e+00 : f32
    %59 = vector.broadcast %cst_22 : f32 to vector<8x1xf32>
    %60 = arith.subf %59, %58 : vector<8x1xf32>
    %61 = math.exp %60 : vector<8x1xf32>
    %62 = math.log1p %61 : vector<8x1xf32>
    %63 = arith.addf %57, %62 : vector<8x1xf32>
    %cst_23 = arith.constant 0.0233333334 : f32
    %64 = vector.broadcast %cst_23 : f32 to vector<8x1xf32>
    %65 = arith.mulf %64, %63 : vector<8x1xf32>
    %c0_24 = arith.constant 0 : index
    %c0_25 = arith.constant 0 : index
    %66 = vector.load %arg5[%c0_24, %c0_25] : memref<8x1xf32, #tpu.memory_space<vmem>>, vector<8x1xf32>
    %cst_26 = arith.constant 0.00999999977 : f32
    %67 = vector.broadcast %cst_26 : f32 to vector<8x1xf32>
    %68 = arith.mulf %67, %44 : vector<8x1xf32>
    %69 = arith.mulf %48, %65 : vector<8x1xf32>
    %70 = arith.addf %68, %69 : vector<8x1xf32>
    %71 = arith.addf %66, %70 : vector<8x1xf32>
    %c0_27 = arith.constant 0 : index
    %c0_28 = arith.constant 0 : index
    %72 = vector.load %arg5[%c0_27, %c0_28] : memref<8x1xf32, #tpu.memory_space<vmem>>, vector<8x1xf32>
    tpu.vector_store %arg5[%c0_27, %c0_28], %71 {strides = array<i32>} : memref<8x1xf32, #tpu.memory_space<vmem>>, vector<8x1xf32>,
    return
  }
  func.func @transform_0(%arg0: i32, %arg1: i32) -> (i32, i32) {
    %c0_i32 = arith.constant 0 : i32
    %c0_i32_0 = arith.constant 0 : i32
    return %arg0, %c0_i32 : i32, i32
  }
  func.func @transform_1(%arg0: i32, %arg1: i32) -> (i32, i32) {
    %c0_i32 = arith.constant 0 : i32
    %c0_i32_0 = arith.constant 0 : i32
    return %c0_i32, %arg1 : i32, i32
  }
  func.func @transform_2(%arg0: i32, %arg1: i32) -> (i32, i32) {
    %c0_i32 = arith.constant 0 : i32
    %c0_i32_0 = arith.constant 0 : i32
    return %arg0, %c0_i32 : i32, i32
  }
  func.func @transform_3(%arg0: i32, %arg1: i32) -> (i32, i32) {
    %c0_i32 = arith.constant 0 : i32
    %c0_i32_0 = arith.constant 0 : i32
    return %arg0, %c0_i32 : i32, i32
  }
}

</mosaic_0001>

<llo_original>
// kernel: _lambda_.1
$region0: #{_lambda_.1}
  #allocation0 [shape = 'u32[]', space=smem, size = 0x4, offset = 0x4, fixed_abs, tag = 'smem constant byte address 0x4 - core index']
  #allocation1 [shape = 'u32[144,128]{1,0:T(1,128)}', space=vmem, size = 0x12000, scoped, tag = 'internal scratch']
  %s0 = inlined_call_operand.vmem [shape: bf16[24,32], index: 0, kind: input, shape index: {}]
  %s1 = inlined_call_operand.vmem [shape: bf16[32,384], index: 1, kind: input, shape index: {}]
  %s2 = inlined_call_operand.vmem [shape: s32[24,1], index: 2, kind: input, shape index: {}]
  %s3 = inlined_call_operand.vmem [shape: f32[24,1], index: 3, kind: output, shape index: {}]
  %s4 = sld [smem:[#allocation0]]
  $region90: #{_lambda_.1} parent=0
    _
  %s6 = ssub.s32 1, %s4
  %s7 = scalar_select 0, %s6, %s4
  $region1: #{_lambda_.1} parent=0
    #allocation2 [shape = 'u8[16384]{0}', space=vmem, size = 0x4000, scoped, tag = 'input window, operand 1']
    loop: start=0, step=1, limit=11
    $region2: #{_lambda_.1} parent=1 // loop_pre_header
      _
    $region3: #{_lambda_.1} parent=1 // loop_header
      %s9 = sphi 0, %s13
      %p10 = scmp.ge.s32.totalorder %s9, 11
      %s16 = sphi 0, %s28
      %s17 = sphi 0, %s24
      %s18 = sphi 0, %s16
      %s19 = sphi 0, %s17
      %s20 = sphi 0, %s18
      %s21 = sphi 0, %s19
      %s31 = sphi 0, %s33
      %s34 = sphi 0, %s31
      %s35 = sphi 0, %s34
      %s51 = sphi 0, %s35
      %s57 = sphi 0, %s59
      %s60 = sphi 0, %s57
      %s61 = sphi 0, %s60
      %s77 = sphi 0, %s61
      %s83 = sphi 0, %s85
      %s86 = sphi 0, %s83
      %s87 = sphi 0, %s86
      %s103 = sphi 0, %s87
      %s109 = sphi 0, %s111
      %s112 = sphi 0, %s109
      %s113 = sphi 0, %s112
      %s129 = sphi 0, %s113
    $region4: #{_lambda_.1} parent=1 // loop_header_branch
      %12 = sbr.rel (%p10) target = $region8
    $region5: #{_lambda_.1} parent=1 // loop_body
      %s14 = ssub.s32 %s9, 1
      %s15 = ssub.s32 %s9, 2
      %s22 = sadd.s32 1, %s17
      %p23 = scmp.ge.s32.totalorder %s22, 3
      %s24 = scalar_select %p23, 0, %s22
      %s25 = sadd.s32 1, %s16
      %s26 = scalar_select %p23, %s25, %s16
      %p27 = scmp.ge.s32.totalorder %s26, 3
      %s28 = scalar_select %p27, 0, %s26
      %s29 = ssub.s32 %s16, %s28
      %p30 = scmp.eq.s32.totalorder %s29, 0
      %s32 = sadd.s32 %s31, 1
      %s33 = scalar_select %p30, %s31, %s32
      %p36 = pneg %p30
      %p37 = scmp.eq.s32.totalorder %s9, 8
      %p38 = por %p36, %p37
      %p39 = scmp.ne.s32.totalorder %s31, %s34
      %p40 = scmp.eq.s32.totalorder %s9, 0
      %p41 = por %p39, %p40
      %p42 = scmp.ne.s32.totalorder %s31, %s34
      %p43 = scmp.eq.s32.totalorder %s14, 8
      %p44 = por %p42, %p43
      %p45 = scmp.ne.s32.totalorder %s34, %s35
      %p46 = scmp.eq.s32.totalorder %s14, 0
      %p47 = por %p45, %p46
      %p48 = scmp.ne.s32.totalorder %s34, %s35
      %p49 = scmp.eq.s32.totalorder %s15, 8
      %p50 = por %p48, %p49
      %p52 = scmp.ne.s32.totalorder %s35, %s51
      %p53 = scmp.eq.s32.totalorder %s15, 0
      %p54 = por %p52, %p53
      %s55 = ssub.s32 %s17, %s24
      %p56 = scmp.eq.s32.totalorder %s55, 0
      %s58 = sadd.s32 %s57, 1
      %s59 = scalar_select %p56, %s57, %s58
      %p62 = pneg %p56
      %p63 = scmp.eq.s32.totalorder %s9, 8
      %p64 = por %p62, %p63
      %p65 = scmp.ne.s32.totalorder %s57, %s60
      %p66 = scmp.eq.s32.totalorder %s9, 0
      %p67 = por %p65, %p66
      %p68 = scmp.ne.s32.totalorder %s57, %s60
      %p69 = scmp.eq.s32.totalorder %s14, 8
      %p70 = por %p68, %p69
      %p71 = scmp.ne.s32.totalorder %s60, %s61
      %p72 = scmp.eq.s32.totalorder %s14, 0
      %p73 = por %p71, %p72
      %p74 = scmp.ne.s32.totalorder %s60, %s61
      %p75 = scmp.eq.s32.totalorder %s15, 8
      %p76 = por %p74, %p75
      %p78 = scmp.ne.s32.totalorder %s61, %s77
      %p79 = scmp.eq.s32.totalorder %s15, 0
      %p80 = por %p78, %p79
      %s81 = ssub.s32 %s16, %s28
      %p82 = scmp.eq.s32.totalorder %s81, 0
      %s84 = sadd.s32 %s83, 1
      %s85 = scalar_select %p82, %s83, %s84
      %p88 = pneg %p82
      %p89 = scmp.eq.s32.totalorder %s9, 8
      %p90 = por %p88, %p89
      %p91 = scmp.ne.s32.totalorder %s83, %s86
      %p92 = scmp.eq.s32.totalorder %s9, 0
      %p93 = por %p91, %p92
      %p94 = scmp.ne.s32.totalorder %s83, %s86
      %p95 = scmp.eq.s32.totalorder %s14, 8
      %p96 = por %p94, %p95
      %p97 = scmp.ne.s32.totalorder %s86, %s87
      %p98 = scmp.eq.s32.totalorder %s14, 0
      %p99 = por %p97, %p98
      %p100 = scmp.ne.s32.totalorder %s86, %s87
      %p101 = scmp.eq.s32.totalorder %s15, 8
      %p102 = por %p100, %p101
      %p104 = scmp.ne.s32.totalorder %s87, %s103
      %p105 = scmp.eq.s32.totalorder %s15, 0
      %p106 = por %p104, %p105
      %s107 = ssub.s32 %s16, %s28
      %p108 = scmp.eq.s32.totalorder %s107, 0
      %s110 = sadd.s32 %s109, 1
      %s111 = scalar_select %p108, %s109, %s110
      %p114 = pneg %p108
      %p115 = scmp.eq.s32.totalorder %s9, 8
      %p116 = por %p114, %p115
      %p117 = scmp.ne.s32.totalorder %s109, %s112
      %p118 = scmp.eq.s32.totalorder %s9, 0
      %p119 = por %p117, %p118
      %p120 = scmp.ne.s32.totalorder %s109, %s112
      %p121 = scmp.eq.s32.totalorder %s14, 8
      %p122 = por %p120, %p121
      %p123 = scmp.ne.s32.totalorder %s112, %s113
      %p124 = scmp.eq.s32.totalorder %s14, 0
      %p125 = por %p123, %p124
      %p126 = scmp.ne.s32.totalorder %s112, %s113
      %p127 = scmp.eq.s32.totalorder %s15, 8
      %p128 = por %p126, %p127
      %p130 = scmp.ne.s32.totalorder %s113, %s129
      %p131 = scmp.eq.s32.totalorder %s15, 0
      %p132 = por %p130, %p131
      %p133 = scmp.le.s32.totalorder 1, %s9
      %p134 = scmp.lt.s32.totalorder %s9, 10
      %p135 = pnand %p133, %p134
      %p136 = pneg %p135
      // Predicated region
      $region9: #{_lambda_.1} parent=5 // pred_check
        _
      $region10: #{_lambda_.1} parent=5 // pred_check_branch
        %138 = sbr.rel (%p135) target = $region12
      $region11: #{_lambda_.1} parent=5 // pred_region
        %s139 = ssub.s32 %s9, 1
      $region12: #{_lambda_.1} parent=5 // pred_fallthru
        _
      %p140 = scmp.lt.s32.totalorder %s9, 9
      // Predicated region
      $region13: #{_lambda_.1} parent=5 // pred_check
        %p141 = pneg %p140
      $region14: #{_lambda_.1} parent=5 // pred_check_branch
        %143 = sbr.rel (%p141) target = $region16
      $region15: #{_lambda_.1} parent=5 // pred_region
        // Predicated region
        $region17: #{_lambda_.1} parent=15 // pred_check
          %p144 = pneg %p41
        $region18: #{_lambda_.1} parent=15 // pred_check_branch
          %146 = sbr.rel (%p144) target = $region20
        $region19: #{_lambda_.1} parent=15 // pred_region
          %p147 = scmp.lt.s32.totalorder %s16, 2
          %s148 = scalar_select %p147, %s16, 2
          %s149 = smul.addr %s148, 4
          %s150 = scalar_lea.vmem %s0, %s149
        $region20: #{_lambda_.1} parent=15 // pred_fallthru
          _
        // Predicated region
        $region21: #{_lambda_.1} parent=15 // pred_check
          %p151 = pneg %p67
        $region22: #{_lambda_.1} parent=15 // pred_check_branch
          %153 = sbr.rel (%p151) target = $region24
        $region23: #{_lambda_.1} parent=15 // pred_region
          %s154 = sand.u32 %s57, 1
          %s155 = sand.u32 %s57, 1
          %s156 = smul.addr %s155, 16
          %s157 = scalar_lea.vmem [#allocation2], %s156
          %s158 = smul.addr %s17, 4
          %s159 = scalar_lea.vmem %s1, %s158
          // Predicated region
          $region25: #{_lambda_.1} parent=23 // pred_check
            _
          $region26: #{_lambda_.1} parent=23 // pred_check_branch
            %161 = sbr.rel (0) target = $region28
          $region27: #{_lambda_.1} parent=23 // pred_region
            // Predicated region
            $region29: #{_lambda_.1} parent=27 // pred_check
              _
            $region30: #{_lambda_.1} parent=27 // pred_check_branch
              %163 = sbr.rel target = $region32
            $region31: #{_lambda_.1} parent=27 // pred_region
              // Predicated region
              $region44: #{_lambda_.1} parent=31 // pred_check
                _
              $region45: #{_lambda_.1} parent=31 // pred_check_branch
                %184 = sbr.rel (0) target = $region47
              $region46: #{_lambda_.1} parent=31 // pred_region
                loop: start=0, step=1, limit=1
                $region48: #{_lambda_.1} parent=46 // loop_pre_header
                  _
                $region49: #{_lambda_.1} parent=46 // loop_header
                  %s186 = sphi 0, %s190
                  %p187 = scmp.ge.s32.totalorder %s186, 1
                  %s191 = sphi %s159, %s159
                  %s192 = sphi %s157, %s157
                $region50: #{_lambda_.1} parent=46 // loop_header_branch
                  %189 = sbr.rel (%p187) target = $region54
                $region51: #{_lambda_.1} parent=46 // loop_body
                  _
                $region52: #{_lambda_.1} parent=46 // loop_footer
                  %s190 = sadd.s32 1, %s186
                $region53: #{_lambda_.1} parent=46 // loop_footer_branch
                  %185 = sbr.rel target = $region49
                $region54: #{_lambda_.1} parent=46 // loop_exit
                  _
                loop: start=0, step=1, limit=1
                $region55: #{_lambda_.1} parent=46 // loop_pre_header
                  _
                $region56: #{_lambda_.1} parent=46 // loop_header
                  %s195 = sphi 0, %s199
                  %p196 = scmp.ge.s32.totalorder %s195, 1
                  %s200 = sphi %s159, %s159
                  %s201 = sphi %s157, %s157
                $region57: #{_lambda_.1} parent=46 // loop_header_branch
                  %198 = sbr.rel (%p196) target = $region61
                $region58: #{_lambda_.1} parent=46 // loop_body
                  %v202 = vld [vmem:[%s200] sm:$0xf]
                  %203 = vst [vmem:[%s201] sm:$0xf] %v202
                  %v204 = vld [vmem:[%s200 + $0xc] sm:$0xf]
                  %205 = vst [vmem:[%s201 + $0x4] sm:$0xf] %v204
                  %v206 = vld [vmem:[%s200 + $0x18] sm:$0xf]
                  %207 = vst [vmem:[%s201 + $0x8] sm:$0xf] %v206
                  %v208 = vld [vmem:[%s200 + $0x24] sm:$0xf]
                  %209 = vst [vmem:[%s201 + $0xc] sm:$0xf] %v208
                $region59: #{_lambda_.1} parent=46 // loop_footer
                  %s199 = sadd.s32 1, %s195
                $region60: #{_lambda_.1} parent=46 // loop_footer_branch
                  %194 = sbr.rel target = $region56
                $region61: #{_lambda_.1} parent=46 // loop_exit
                  _
              $region47: #{_lambda_.1} parent=31 // pred_fallthru
                _
            $region32: #{_lambda_.1} parent=27 // pred_fallthru
              _
            // Predicated region
            $region33: #{_lambda_.1} parent=27 // pred_check
              _
            $region34: #{_lambda_.1} parent=27 // pred_check_branch
              %165 = sbr.rel (0) target = $region36
            $region35: #{_lambda_.1} parent=27 // pred_region
              loop: start=0, step=1, limit=1
              $region37: #{_lambda_.1} parent=35 // loop_pre_header
                _
              $region38: #{_lambda_.1} parent=35 // loop_header
                %s168 = sphi 0, %s172
                %p169 = scmp.ge.s32.totalorder %s168, 1
                %s173 = sphi %s159, %s159
                %s174 = sphi %s157, %s157
              $region39: #{_lambda_.1} parent=35 // loop_header_branch
                %171 = sbr.rel (%p169) target = $region43
              $region40: #{_lambda_.1} parent=35 // loop_body
                %v175 = vld [vmem:[%s173] sm:$0xf]
                %176 = vst [vmem:[%s174] sm:$0xf] %v175
                %v177 = vld [vmem:[%s173 + $0xc] sm:$0xf]
                %178 = vst [vmem:[%s174 + $0x4] sm:$0xf] %v177
                %v179 = vld [vmem:[%s173 + $0x18] sm:$0xf]
                %180 = vst [vmem:[%s174 + $0x8] sm:$0xf] %v179
                %v181 = vld [vmem:[%s173 + $0x24] sm:$0xf]
                %182 = vst [vmem:[%s174 + $0xc] sm:$0xf] %v181
              $region41: #{_lambda_.1} parent=35 // loop_footer
                %s172 = sadd.s32 1, %s168
              $region42: #{_lambda_.1} parent=35 // loop_footer_branch
                %167 = sbr.rel target = $region38
              $region43: #{_lambda_.1} parent=35 // loop_exit
                _
            $region36: #{_lambda_.1} parent=27 // pred_fallthru
              _
          $region28: #{_lambda_.1} parent=23 // pred_fallthru
            _
          %210 = vnop
        $region24: #{_lambda_.1} parent=15 // pred_fallthru
          _
        // Predicated region
        $region62: #{_lambda_.1} parent=15 // pred_check
          %p211 = pneg %p93
        $region63: #{_lambda_.1} parent=15 // pred_check_branch
          %213 = sbr.rel (%p211) target = $region65
        $region64: #{_lambda_.1} parent=15 // pred_region
          %p214 = scmp.lt.s32.totalorder %s16, 2
          %s215 = scalar_select %p214, %s16, 2
          %s216 = smul.addr %s215, 8
          %s217 = scalar_lea.vmem %s2, %s216
        $region65: #{_lambda_.1} parent=15 // pred_fallthru
          _
      $region16: #{_lambda_.1} parent=5 // pred_fallthru
        _
      %p218 = scmp.le.s32.totalorder 1, %s9
      %p219 = scmp.lt.s32.totalorder %s9, 10
      %p220 = pnand %p218, %p219
      %p221 = pneg %p220
      // Predicated region
      $region66: #{_lambda_.1} parent=5 // pred_check
        _
      $region67: #{_lambda_.1} parent=5 // pred_check_branch
        %223 = sbr.rel (%p220) target = $region69
      $region68: #{_lambda_.1} parent=5 // pred_region
        %s224 = ssub.s32 %s9, 1
        %s225 = sand.u32 %s60, 1
        %s226 = sand.u32 %s60, 1
        %s227 = smul.addr %s226, 16
        %s228 = scalar_lea.vmem [#allocation2], %s227
        // Predicated region
        $region70: #{_lambda_.1} parent=68 // pred_check
          %p229 = pneg %p73
        $region71: #{_lambda_.1} parent=68 // pred_check_branch
          %231 = sbr.rel (%p229) target = $region73
        $region72: #{_lambda_.1} parent=68 // pred_region
          _
        $region73: #{_lambda_.1} parent=68 // pred_fallthru
          _
        %p232 = scmp.lt.s32.totalorder %s18, 2
        %s233 = scalar_select %p232, %s18, 2
        %s234 = smul.addr %s233, 4
        %s235 = scalar_lea.vmem %s0, %s234
        %p236 = pneg %p47
        %p237 = pneg %p44
        %s238 = sand.u32 %s60, 1
        %s239 = sand.u32 %s60, 1
        %s240 = smul.addr %s239, 16
        %s241 = scalar_lea.vmem [#allocation2], %s240
        %p242 = pneg %p73
        %p243 = pneg %p70
        %p244 = scmp.lt.s32.totalorder %s18, 2
        %s245 = scalar_select %p244, %s18, 2
        %s246 = smul.addr %s245, 8
        %s247 = scalar_lea.vmem %s2, %s246
        %p248 = pneg %p99
        %p249 = pneg %p96
        %p250 = pneg %p125
        %p251 = pneg %p122
        %p252 = scmp.lt.s32.totalorder %s18, 2
        %s253 = scalar_select %p252, %s18, 2
        %s254 = smul.addr %s253, 8
        %s255 = scalar_lea.vmem %s3, %s254
        %p256 = scmp.lt.s32.totalorder %s18, 2
        %s257 = scalar_select %p256, %s18, 2
        %s258 = smul.addr %s257, 4
        %s259 = scalar_lea.vmem %s0, %s258
        %p260 = scmp.lt.s32.totalorder %s18, 2
        %s261 = scalar_select %p260, %s18, 2
        %s262 = smul.addr %s261, 8
        %s263 = scalar_lea.vmem %s2, %s262
        %p264 = scmp.lt.s32.totalorder %s18, 2
        %s265 = scalar_select %p264, %s18, 2
        %s266 = smul.addr %s265, 8
        %s267 = scalar_lea.vmem %s3, %s266
        %p269 = scmp.eq.s32.totalorder %s19, 0
        // Predicated region
        $region74: #{_lambda_.1} parent=68 // pred_check
          %p270 = pneg %p269
        $region75: #{_lambda_.1} parent=68 // pred_check_branch
          %272 = sbr.rel (%p270) target = $region77
        $region76: #{_lambda_.1} parent=68 // pred_region
          %vm273 = vcmask 7168
          %274 = vst.msk [vmem:[%s267] sm:$0xff] %vm273, 0.0
        $region77: #{_lambda_.1} parent=68 // pred_fallthru
          _
        %v275 = vld [vmem:[%s259] sm:$0xf]
        %v276 = vld [vmem:[%s228] sm:$0xf]
        %v277 = vld [vmem:[%s228 + $0x4] sm:$0xf]
        %v278 = vld [vmem:[%s228 + $0x8] sm:$0xf]
        %v279 = vld [vmem:[%s228 + $0xc] sm:$0xf]
        %v284 = vunpack.c.l.b16 %v276
        %v285 = vunpack.c.l.b16 %v277
        %v286 = vunpack.c.l.b16 %v278
        %v287 = vunpack.c.l.b16 %v279
        %v288 = vpack.c.b16 %v285, %v284
        %v289 = vpack.c.b16 %v287, %v286
        %vm292 = vcmask 261120
        %v294 = vsel %vm292, %v275, 0
        %296 = vmatprep.subr.bf16.mxu0 0
        %297 = vmatpush1.bf16.msra.mxu0 %v288
        %298 = vmatprep.subr.bf16.mxu0 0
        %299 = vmatpush1.bf16.msra.mxu0 %v289
        %300 = vmatprep.subr.bf16.mxu0 0
        %301 = vmatpush1.bf16.msra.mxu0 0
        %302 = vmatprep.subr.bf16.mxu0 0
        %303 = vmatpush1.bf16.msra.mxu0 0
        %304 = vmatprep.subr.bf16.mxu0 0
        %305 = vmatpush1.bf16.msra.mxu0 0
        %306 = vmatprep.subr.bf16.mxu0 0
        %307 = vmatpush1.bf16.msra.mxu0 0
        %308 = vmatprep.subr.bf16.mxu0 0
        %309 = vmatpush1.bf16.msra.mxu0 0
        %310 = vmatprep.subr.bf16.mxu0 0
        %311 = vmatpush1.bf16.msra.mxu0 0
        %312 = vmatprep.subr.bf16.mxu0 0
        %313 = vmatpush1.bf16.msra.mxu0 0
        %314 = vmatprep.subr.bf16.mxu0 0
        %315 = vmatpush1.bf16.msra.mxu0 0
        %316 = vmatprep.subr.bf16.mxu0 0
        %317 = vmatpush1.bf16.msra.mxu0 0
        %318 = vmatprep.subr.bf16.mxu0 0
        %319 = vmatpush1.bf16.msra.mxu0 0
        %320 = vmatprep.subr.bf16.mxu0 0
        %321 = vmatpush1.bf16.msra.mxu0 0
        %322 = vmatprep.subr.bf16.mxu0 0
        %323 = vmatpush1.bf16.msra.mxu0 0
        %324 = vmatprep.subr.bf16.mxu0 0
        %325 = vmatpush1.bf16.msra.mxu0 0
        %326 = vmatprep.subr.bf16.mxu0 0
        %327 = vmatpush1.bf16.msra.mxu0 0
        %328 = vmatprep.mubr.bf16.mxu0 0
        %329 = vmatmul.mubr.bf16.gmra.mrb[0].mxu0 %v294
        %v330 = vpop.f32.mrb[0].mxu0
        %v331 = vadd.f32 0.0, %v330
        %v332 = vpop.f32.mrb[0].mxu0
        %v333 = vpop.f32.mrb[0].mxu0
        %v334 = vpop.f32.mrb[0].mxu0
        %335 = vdwg.mxu0
        %v336 = vmax.f32 %v331, -1.0
        %v337 = vmin.f32 %v336, 1.0
        %v338 = vadd.f32 %v337, 1.0
        %v339 = vmul.f32 %v338, 0.5
        %v340 = vmul.f32 %v339, %v339
        %v341 = vmul.f32 %v340, %v339
        %v342 = vmul.f32 %v341, 60.0
        %v343 = vadd.f32 %v342, -17.75
        %v344 = vmax.f32 %v343, 0.0
        %v345 = vand.u32 2147483647, %v343
        %v346 = vsub.f32 0.0, %v345
        %v347 = vmul.f32 %v346, 1.442695
        %v348 = vpow.pop %v347
        %v349 = vadd.f32 %v348, 1.0
        %v350 = vlog2.pop %v349
        %v351 = vmul.f32 %v350, 0.6931472
        %v352 = vmul.f32 -0.5, %v348
        %v353 = vadd.f32 %v352, 1.0
        %v354 = vmul.f32 %v353, %v348
        %v355 = vand.u32 2147483647, %v348
        %vm356 = vcmp.lt.f32.partialorder %v355, 0.0004427343
        %v357 = vsel %vm356, %v354, %v351
        %v358 = vadd.f32 %v344, %v357
        %v359 = vlaneseq
        %v360 = vand.u32 %v359, 127
        %s361 = smul.u32 %s19, 128
        %v362 = vstv %s361
        %v363 = vadd.s32 %v360, %v362
        %v364 = vld [vmem:[%s263] sm:$0xff]
        %365 = vset.pattern.permute.xlu0 0
        %366 = vperm.xlu0 %365, %v364
        %v367 = vpop.permute.xlu0 %366
        %vm368 = vcmp.eq.s32.totalorder %v363, %v367
        %vm369 = vcmp.lt.s32.totalorder %v363, 300
        %vm370 = vmxor %vm368, 1
        %v371 = vsel %vm369, 1, 0
        %vm372 = vcmp.eq.s32.totalorder %v371, 1
        %vm373 = vmand %vm372, %vm370
        %v374 = vsel %vm373, %v358, 0.0
        %375 = vadd.xlane.f32.xlu0 %v374
        %v376 = vpop.xlane.xlu0 %375
        %v377 = vsel %vm368, 1, 0
        %v378 = vcvt.s32.f32 %v377
        %379 = vadd.xlane.f32.xlu0 %v378
        %v380 = vpop.xlane.xlu0 %379
        %v381 = vmul.f32 %v378, %v341
        %382 = vadd.xlane.f32.xlu0 %v381
        %v383 = vpop.xlane.xlu0 %382
        %v384 = vmul.f32 %v383, -60.0
        %v385 = vadd.f32 %v384, 41.75
        %v386 = vmax.f32 %v385, 0.0
        %v387 = vand.u32 2147483647, %v385
        %v388 = vsub.f32 0.0, %v387
        %v389 = vmul.f32 %v388, 1.442695
        %v390 = vpow.pop %v389
        %v391 = vadd.f32 %v390, 1.0
        %v392 = vlog2.pop %v391
        %v393 = vmul.f32 %v392, 0.6931472
        %v394 = vmul.f32 -0.5, %v390
        %v395 = vadd.f32 %v394, 1.0
        %v396 = vmul.f32 %v395, %v390
        %v397 = vand.u32 2147483647, %v390
        %vm398 = vcmp.lt.f32.partialorder %v397, 0.0004427343
        %v399 = vsel %vm398, %v396, %v393
        %v400 = vadd.f32 %v386, %v399
        %v401 = vmul.f32 %v400, 0.023333333
        %v402 = vld [vmem:[%s267] sm:$0xff]
        %v403 = vmul.f32 %v376, 0.01
        %v404 = vmul.f32 %v380, %v401
        %v405 = vadd.f32 %v403, %v404
        %v406 = vadd.f32 %v402, %v405
        %vm407 = vcmask 7168
        %408 = vst.msk [vmem:[%s267] sm:$0xff] %vm407, %v406
        %p409 = scmp.lt.s32.totalorder %s18, 2
        %s410 = scalar_select %p409, %s18, 2
        %s411 = smul.addr %s410, 8
        %s412 = scalar_lea.vmem %s3, %s411
        // Predicated region
        $region78: #{_lambda_.1} parent=68 // pred_check
          %p413 = pneg %p122
        $region79: #{_lambda_.1} parent=68 // pred_check_branch
          %415 = sbr.rel (%p413) target = $region81
        $region80: #{_lambda_.1} parent=68 // pred_region
          _
        $region81: #{_lambda_.1} parent=68 // pred_fallthru
          _
      $region69: #{_lambda_.1} parent=5 // pred_fallthru
        _
      %p416 = scmp.le.s32.totalorder 2, %s9
      // Predicated region
      $region82: #{_lambda_.1} parent=5 // pred_check
        %p417 = pneg %p416
      $region83: #{_lambda_.1} parent=5 // pred_check_branch
        %419 = sbr.rel (%p417) target = $region85
      $region84: #{_lambda_.1} parent=5 // pred_region
        %s420 = ssub.s32 %s9, 2
        // Predicated region
        $region86: #{_lambda_.1} parent=84 // pred_check
          %p421 = pneg %p128
        $region87: #{_lambda_.1} parent=84 // pred_check_branch
          %423 = sbr.rel (%p421) target = $region89
        $region88: #{_lambda_.1} parent=84 // pred_region
          %p424 = scmp.lt.s32.totalorder %s20, 2
          %s425 = scalar_select %p424, %s20, 2
          %s426 = smul.addr %s425, 8
          %s427 = scalar_lea.vmem %s3, %s426
        $region89: #{_lambda_.1} parent=84 // pred_fallthru
          _
      $region85: #{_lambda_.1} parent=5 // pred_fallthru
        _
    $region6: #{_lambda_.1} parent=1 // loop_footer
      %s13 = sadd.s32 1, %s9
    $region7: #{_lambda_.1} parent=1 // loop_footer_branch
      %8 = sbr.rel target = $region3
    $region8: #{_lambda_.1} parent=1 // loop_exit
      _

</llo_original>
